<compile_context>
chip_gen: v5e
topology: v5e:2x2
jax: 0.10.0
libtpu: 0.0.40
codegen_flags: <defaults>
</compile_context>

<pallas_src>
import jax
import jax.numpy as jnp
import numpy as np
from jax.experimental import pallas as pl
from jax.experimental.pallas import tpu as pltpu


def _round_up(x, m):
    return (x + m - 1) // m * m


_ROLL_MATCHES_JNP = None


def _roll_matches_jnp():
    """pltpu.roll matches jnp.roll (positive shift moves data toward higher lane
    indices) on current JAX; probe the convention once at runtime so the lane
    de-interleave below stays correct even if that ever changes."""
    global _ROLL_MATCHES_JNP
    if _ROLL_MATCHES_JNP is None:
        def probe_kernel(x_ref, o_ref):
            o_ref[...] = pltpu.roll(x_ref[...], 1, axis=1)

        x = np.tile(np.arange(128, dtype=np.float32)[None, :], (8, 1))
        with jax.ensure_compile_time_eval():
            y = pl.pallas_call(
                probe_kernel,
                out_shape=jax.ShapeDtypeStruct((8, 128), jnp.float32),
            )(x)
            # jnp.roll convention: lane 1 of the rolled row holds original lane 0.
            _ROLL_MATCHES_JNP = bool(y[0, 1] == 0.0)
    return _ROLL_MATCHES_JNP


def _build_kernel(*, tile_rows, rows, mode, roll_is_jnp):
    """Kernel over an interleaved (tile_rows, 128) coordinate tile.

    Lane l of a row holds coordinate (l % 4) of box (32*row + l // 4) -- the
    natural row-major view of (N, 4) xyxy boxes.  Per-box results are valid at
    lanes with l % 4 == 0; the other lanes carry don't-care values.
    """

    def lane_next(v, k):
        # result[:, l] = v[:, (l + k) % 128]   (fetch from k lanes ahead)
        shift = (128 - k) if roll_is_jnp else k
        return pltpu.roll(v, shift, axis=1)

    def kernel(src_ref, tgt_ref, out_ref):
        s = src_ref[...]
        t = tgt_ref[...]

        # Widths/heights: lane%4==0 -> width, lane%4==1 -> height.
        ds = lane_next(s, 2) - s
        dt = lane_next(t, 2) - t
        area_s = ds * lane_next(ds, 1)            # valid at lane%4==0
        area_t = dt * lane_next(dt, 1)

        lo = jnp.minimum(s, t)
        hi = jnp.maximum(s, t)

        di = jnp.maximum(lane_next(lo, 2) - hi, 0.0)   # intersection w/h
        inter = di * lane_next(di, 1)

        de = jnp.maximum(lane_next(hi, 2) - lo, 0.0)   # enclosing-box w/h
        enclose = de * lane_next(de, 1)

        union = area_s + area_t - inter
        # Exact reciprocals on the EUP slot (approx=True is too coarse for a
        # 1e-5 check); the kernel is HBM-bound so this is free either way.
        iou = inter * pl.reciprocal(union, approx=False)
        giou = iou - (enclose - union) * pl.reciprocal(enclose, approx=False)
        loss = 1.0 - giou                          # valid at lane % 4 == 0

        if mode == "none":
            # Lane-dense (tile_rows, 128) store; the wrapper strides out the
            # valid lane of every 4-lane group.
            out_ref[...] = loss
        else:
            # Fused reduction: emit only a (1, 128) partial sum per tile.
            lane = jax.lax.broadcasted_iota(jnp.int32, loss.shape, 1)
            valid = (lane % 4) == 0
            if rows % tile_rows:
                # Ragged last block: drop rows that lie past the real array.
                row = jax.lax.broadcasted_iota(jnp.int32, loss.shape, 0)
                row_global = pl.program_id(0) * tile_rows + row
                valid = jnp.logical_and(valid, row_global < rows)
            masked = jnp.where(valid, loss, 0.0)   # select: no NaN leakage
            out_ref[0] = jnp.sum(masked, axis=0, keepdims=True)

    return kernel


def giou_loss(source_boxes, target_boxes, reduction="none", *,
              max_tile_rows=2048):
    """GIoU loss of matched xyxy box pairs.  source/target: (N, 4)."""
    if reduction not in ("none", "mean", "sum"):
        raise ValueError(f"unknown reduction: {reduction!r}")
    assert source_boxes.shape == target_boxes.shape
    assert source_boxes.ndim == 2 and source_boxes.shape[-1] == 4
    n = source_boxes.shape[0]
    if n == 0:
        return (jnp.zeros((0,), jnp.float32) if reduction == "none"
                else jnp.zeros((), jnp.float32))

    roll_is_jnp = _roll_matches_jnp()

    src = jnp.asarray(source_boxes, jnp.float32)
    tgt = jnp.asarray(target_boxes, jnp.float32)

    # The kernel consumes the free row-major reshape of (N, 4) into (rows, 128)
    # (32 boxes x 4 interleaved coords per 128-lane row) -- no transpose copy.
    # Only if N is not a multiple of 32 do we pay one pad copy; padded entries
    # are unit boxes so their loss is exactly 0 and the fused partial sums need
    # no extra masking for them.
    n32 = _round_up(n, 32)
    if n32 != n:
        filler = jnp.broadcast_to(
            jnp.asarray([0.0, 0.0, 1.0, 1.0], jnp.float32), (n32 - n, 4))
        src = jnp.concatenate([src, filler], axis=0)
        tgt = jnp.concatenate([tgt, filler], axis=0)
    rows = n32 // 32
    src_il = src.reshape(rows, 128)   # free, contiguous view
    tgt_il = tgt.reshape(rows, 128)

    # Tile selection: big tiles amortize the ~0.35us/step overhead, but keep
    # grid >= 2 whenever there is enough work so the 'parallel' axis can shard
    # across v7x's two TensorCores (neutral on single-TC v5e/v6e).
    if rows <= 8:
        tile_rows = rows
    else:
        tile_rows = min(max_tile_rows, _round_up(pl.cdiv(rows, 2), 8))
    grid = pl.cdiv(rows, tile_rows)

    mode = "none" if reduction == "none" else "reduce"
    kernel = _build_kernel(tile_rows=tile_rows, rows=rows, mode=mode,
                           roll_is_jnp=roll_is_jnp)

    in_specs = [pl.BlockSpec((tile_rows, 128), lambda i: (i, 0)),
                pl.BlockSpec((tile_rows, 128), lambda i: (i, 0))]
    if mode == "none":
        out_shape = jax.ShapeDtypeStruct((rows, 128), jnp.float32)
        out_specs = pl.BlockSpec((tile_rows, 128), lambda i: (i, 0))
        out_bytes = rows * 128 * 4
    else:
        out_shape = jax.ShapeDtypeStruct((grid, 1, 128), jnp.float32)
        out_specs = pl.BlockSpec((1, 1, 128), lambda i: (i, 0, 0))
        out_bytes = grid * 128 * 4

    elems = rows * 128
    cost = pl.CostEstimate(flops=30 * elems, transcendentals=2 * elems,
                           bytes_accessed=2 * elems * 4 + out_bytes)

    out = pl.pallas_call(
        kernel,
        out_shape=out_shape,
        grid_spec=pltpu.PrefetchScalarGridSpec(
            num_scalar_prefetch=0,
            grid=(grid,),
            in_specs=in_specs,
            out_specs=out_specs,
        ),
        compiler_params=pltpu.CompilerParams(
            dimension_semantics=("parallel",),
            # Explicit scoped-VMEM limit: 2048-row tiles comfortably fit here
            # on every generation (v5e's default would be the tightest).
            vmem_limit_bytes=32 * 1024 * 1024,
        ),
        cost_estimate=cost,
    )(src_il, tgt_il)

    if reduction == "none":
        # Free bitcast back to (n32, 4); take the valid lane of each 4-group.
        return out.reshape(n32, 4)[:n, 0]
    total = jnp.sum(out)
    return total / n if reduction == "mean" else total


def _make_boxes(key, n):
    """Deterministic, valid xyxy boxes."""
    k1, k2 = jax.random.split(key)
    xy = jax.random.uniform(k1, (n, 2), minval=0.0, maxval=0.6)
    wh = jax.random.uniform(k2, (n, 2), minval=0.05, maxval=0.4)
    return jnp.concatenate([xy, xy + wh], axis=-1).astype(jnp.float32)


def _ref_giou_loss(s, t):
    """Plain-JAX reference (matched-pair GIoU loss)."""
    area_s = (s[:, 2] - s[:, 0]) * (s[:, 3] - s[:, 1])
    area_t = (t[:, 2] - t[:, 0]) * (t[:, 3] - t[:, 1])
    lt = jnp.maximum(s[:, :2], t[:, :2])
    rb = jnp.minimum(s[:, 2:], t[:, 2:])
    wh = jnp.clip(rb - lt, 0.0)
    inter = wh[:, 0] * wh[:, 1]
    union = area_s + area_t - inter
    iou = inter / union
    elt = jnp.minimum(s[:, :2], t[:, :2])
    erb = jnp.maximum(s[:, 2:], t[:, 2:])
    ewh = jnp.clip(erb - elt, 0.0)
    enclose = ewh[:, 0] * ewh[:, 1]
    giou = iou - (enclose - union) / enclose
    return 1.0 - giou


if __name__ == "__main__":
    key = jax.random.PRNGKey(0)
    ks, kt = jax.random.split(key)
    N = 256
    source_boxes = _make_boxes(ks, N)   # (256, 4)
    target_boxes = _make_boxes(kt, N)   # (256, 4)
    ref = _ref_giou_loss(source_boxes, target_boxes)

    # 'none': full per-box loss.
    loss = giou_loss(source_boxes, target_boxes, reduction="none")
    jax.block_until_ready(loss)
    assert loss.shape == (N,)
    assert jnp.allclose(loss, ref, atol=1e-5, rtol=1e-5)

    # Fused reductions (kernel emits per-tile partial sums only).
    loss_mean = giou_loss(source_boxes, target_boxes, reduction="mean")
    loss_sum = giou_loss(source_boxes, target_boxes, reduction="sum")
    jax.block_until_ready((loss_mean, loss_sum))
    assert jnp.allclose(loss_mean, jnp.mean(ref), atol=1e-5, rtol=1e-5)
    assert jnp.allclose(loss_sum, jnp.sum(ref), atol=1e-4, rtol=1e-5)

    # Ragged sizes: exercise N % 32 != 0 padding, grid >= 2 and the
    # partial-last-block row masking of the fused reduction.
    for n2 in (50, 1100):
        k1, k2 = jax.random.split(jax.random.PRNGKey(n2))
        s2 = _make_boxes(k1, n2)
        t2 = _make_boxes(k2, n2)
        ref2 = _ref_giou_loss(s2, t2)
        out2 = giou_loss(s2, t2, reduction="none")
        m2 = giou_loss(s2, t2, reduction="mean")
        jax.block_until_ready((out2, m2))
        assert out2.shape == (n2,)
        assert jnp.allclose(out2, ref2, atol=1e-5, rtol=1e-5)
        assert jnp.allclose(m2, jnp.mean(ref2), atol=1e-5, rtol=1e-5)

    print("KERNEL_OK")
</pallas_src>

<mosaic_0001>
module attributes {stable_mosaic.version = 11 : i64} {
  func.func @probe_kernel(%arg0: memref<8x128xf32, #tpu.memory_space<vmem>>, %arg1: memref<8x128xf32, #tpu.memory_space<vmem>>) attributes {dimension_semantics = [], scalar_prefetch = 0 : i64, scratch_operands = 0 : i64, tpu.core_type = #tpu.core_type<tc>} {
    %c0 = arith.constant 0 : index
    %c0_0 = arith.constant 0 : index
    %0 = vector.load %arg0[%c0, %c0_0] : memref<8x128xf32, #tpu.memory_space<vmem>>, vector<8x128xf32>
    %c1_i32 = arith.constant 1 : i32
    %1 = tpu.dynamic_rotate %0 by %c1_i32 dim 1 : vector<8x128xf32>, i32 -> vector<8x128xf32>
    %c0_1 = arith.constant 0 : index
    %c0_2 = arith.constant 0 : index
    %2 = vector.load %arg1[%c0_1, %c0_2] : memref<8x128xf32, #tpu.memory_space<vmem>>, vector<8x128xf32>
    tpu.vector_store %arg1[%c0_1, %c0_2], %1 {strides = array<i32>} : memref<8x128xf32, #tpu.memory_space<vmem>>, vector<8x128xf32>,
    return
  }
}

</mosaic_0001>

<llo_original>
// kernel: tpu_custom_call.1
$region0: #{tpu_custom_call.1}
  #allocation0 [shape = 'u32[]', space=smem, size = 0x4, offset = 0x4, fixed_abs, tag = 'smem constant byte address 0x4 - core index']
  #allocation1 [shape = 'u32[72,128]{1,0:T(1,128)}', space=vmem, size = 0x9000, scoped, tag = 'internal scratch']
  %s0 = inlined_call_operand.hbm [shape: f32[8,128], index: 0, kind: input, shape index: {}]
  %s1 = inlined_call_operand.hbm [shape: f32[8,128], index: 1, kind: output, shape index: {}]
  %s2 = sld [smem:[#allocation0]]
  $region18: #{tpu_custom_call.1} parent=0
    _
  %s4 = ssub.s32 1, %s2
  %s5 = scalar_select 0, %s4, %s2
  $region1: #{tpu_custom_call.1} parent=0
    #allocation2 [shape = 'u8[4096]{0}', space=vmem, size = 0x1000, scoped, tag = 'input window, operand 0, single buffered']
    #allocation3 [shape = 's32[1]{0}', space=sflag, size = 0x4, scoped, tag = 'scoped memory for tpu_custom_call.1']
    #allocation4 [shape = 's32[1]{0}', space=sflag, size = 0x4, scoped, tag = 'scoped memory for tpu_custom_call.1']
    #allocation5 [shape = 'u8[4096]{0}', space=vmem, size = 0x1000, scoped, tag = 'output window, operand 0, single buffered']
    %6 = vsyncpa [#allocation3], 0
    %7 = vsyncpa [#allocation4], 0
    // Predicated region
    $region2: #{tpu_custom_call.1} parent=1 // pred_check
      _
    $region3: #{tpu_custom_call.1} parent=1 // pred_check_branch
      %9 = sbr.rel (0) target = $region5
    $region4: #{tpu_custom_call.1} parent=1 // pred_region
      %11 = vsyncadd [#allocation3], 0
      %s13 = sshll.u32 %s0, 4
      %s14 = int_to_ptr.hbm [resolvable:$true] %s13
      %s15 = sshll.u32 [#allocation2], 4
      %s16 = int_to_ptr.vmem [resolvable:$true] %s15
      %18 = dma.hbm_to_vmem [thread:$0]  %s14, 128, %s16, [#allocation3]
    $region5: #{tpu_custom_call.1} parent=1 // pred_fallthru
      _
    // Predicated region
    $region6: #{tpu_custom_call.1} parent=1 // pred_check
      _
    $region7: #{tpu_custom_call.1} parent=1 // pred_check_branch
      %20 = sbr.rel (0) target = $region9
    $region8: #{tpu_custom_call.1} parent=1 // pred_region
      %22 = dma.done [#allocation3], 128
    $region9: #{tpu_custom_call.1} parent=1 // pred_fallthru
      _
    %v23 = vld [vmem:[#allocation2] sm:$0xff]
    %24 = vrot.lane.b32.xlu0 %v23, 1
    %v25 = vpop.permute.xlu0 %24
    %26 = vst [vmem:[#allocation5] sm:$0xff] %v25
    // Predicated region
    $region10: #{tpu_custom_call.1} parent=1 // pred_check
      _
    $region11: #{tpu_custom_call.1} parent=1 // pred_check_branch
      %28 = sbr.rel (0) target = $region13
    $region12: #{tpu_custom_call.1} parent=1 // pred_region
      %30 = vsyncadd [#allocation4], 0
      %s32 = sshll.u32 [#allocation5], 4
      %s33 = int_to_ptr.vmem [resolvable:$true] %s32
      %s34 = sshll.u32 %s1, 4
      %s35 = int_to_ptr.hbm [resolvable:$true] %s34
      %37 = dma.vmem_to_hbm [thread:$0]  %s33, 128, %s35, [#allocation4]
    $region13: #{tpu_custom_call.1} parent=1 // pred_fallthru
      _
    // Predicated region
    $region14: #{tpu_custom_call.1} parent=1 // pred_check
      _
    $region15: #{tpu_custom_call.1} parent=1 // pred_check_branch
      %39 = sbr.rel (0) target = $region17
    $region16: #{tpu_custom_call.1} parent=1 // pred_region
      %41 = dma.done [#allocation4], 128
    $region17: #{tpu_custom_call.1} parent=1 // pred_fallthru
      _
    %42 = vsyncpa [#allocation3], 1
    %43 = vsyncpa [#allocation4], 1

</llo_original>
